<compile_context>
chip_gen: v6e
topology: v6e:2x2x1
jax: 0.10.0
libtpu: 0.0.40
codegen_flags: <defaults>
</compile_context>

<pallas_src>
import functools

import jax
import jax.numpy as jnp
from jax.experimental import pallas as pl
from jax.experimental.pallas import tpu as pltpu

LANES = 128
# Bytes of each input streamed per grid step (constant across dtypes).
BYTES_PER_INPUT_PER_STEP = 4 * 1024 * 1024
# 2 inputs x 2 pipeline buffers x 4 MiB = 16 MiB, plus accumulator/output.
VMEM_LIMIT_BYTES = 32 * 1024 * 1024


def _round_up(x, m):
    return ((x + m - 1) // m) * m


def _num_tensorcores():
    """Best-effort TensorCore count (v7x has 2 per chip); defaults to 1."""
    try:
        info = pltpu.get_tpu_info()
        for attr in ("num_cores", "core_count", "num_tensorcores",
                     "tensorcores_per_chip"):
            v = getattr(info, attr, None)
            if isinstance(v, int) and v >= 1:
                return v
    except Exception:
        pass
    return 1


def _mse_kernel(x_ref, y_ref, o_ref, acc_ref, *,
                rows, tile_rows, steps_per_split, nblocks):
    step = pl.program_id(1)

    # Zero the vreg-sized accumulator at the start of each split.
    @pl.when(step == 0)
    def _():
        acc_ref[...] = jnp.zeros_like(acc_ref)

    # Global row-block this step was meant to process.  The last step of a
    # split may be a clamped, redundant step (odd block count); its rows all
    # fall past `rows` and are masked to zero in the edge branch below.
    blk = pl.program_id(0) * steps_per_split + step

    def _accumulate(d):
        sq = d * d
        # Fold the tile into one (8, 128) vreg: in-register add tree; the
        # accumulator read-modify-write touches a single vreg per step.
        acc_ref[...] += jnp.sum(sq.reshape(tile_rows // 8, 8, LANES), axis=0)

    # Interior blocks: no row mask (pure sub/mul/add on the VPU).
    @pl.when(blk < nblocks - 1)
    def _():
        d = x_ref[...].astype(jnp.float32) - y_ref[...].astype(jnp.float32)
        _accumulate(d)

    # Edge block and clamped redundant step (blk >= nblocks - 1): mask rows
    # past the true end of the flattened array before squaring.
    @pl.when(blk >= nblocks - 1)
    def _():
        row0 = blk * tile_rows
        row_ids = row0 + jax.lax.broadcasted_iota(jnp.int32, (tile_rows, LANES), 0)
        d = x_ref[...].astype(jnp.float32) - y_ref[...].astype(jnp.float32)
        d = jnp.where(row_ids < rows, d, 0.0)
        _accumulate(d)

    # Finalize this split: one cross-lane/sublane reduce, broadcast into the
    # lane-dense (1, 8, 128) output block (wrapper reads position [.., 0, 0]).
    @pl.when(step == steps_per_split - 1)
    def _():
        o_ref[...] = jnp.full(o_ref.shape, jnp.sum(acc_ref[...]), dtype=o_ref.dtype)


def mse_loss(est_sig, clean_sig):
    assert est_sig.shape == clean_sig.shape, "MSELoss requires matching shapes"
    n = est_sig.size
    itemsize = jnp.dtype(est_sig.dtype).itemsize

    # Flatten (free).  Pad only when n is not a multiple of 128 lanes; padded
    # positions are zero in BOTH inputs and the 1/n scale uses the true count.
    flat_x = est_sig.reshape(-1)
    flat_y = clean_sig.reshape(-1)
    n128 = _round_up(n, LANES)
    if n128 != n:
        flat_x = jnp.pad(flat_x, (0, n128 - n))
        flat_y = jnp.pad(flat_y, (0, n128 - n))
    rows = n128 // LANES
    x2d = flat_x.reshape(rows, LANES)
    y2d = flat_y.reshape(rows, LANES)

    # Minimum sublane multiple: 8 (4-byte), 16 (2-byte), 32 (1-byte) dtypes.
    sub_mult = max(8, 32 // itemsize)
    # Dtype-aware tile: constant bytes per step regardless of element width.
    budget_rows = max(sub_mult, BYTES_PER_INPUT_PER_STEP // (LANES * itemsize))
    budget_rows = _round_up(budget_rows, sub_mult)
    tile_rows = min(budget_rows, _round_up(rows, sub_mult))

    nblocks = pl.cdiv(rows, tile_rows)
    # One split per TensorCore (1 on v5e/v6e, 2 on v7x when detected); never
    # more splits than blocks.
    num_splits = max(1, min(_num_tensorcores(), nblocks))
    steps_per_split = pl.cdiv(nblocks, num_splits)

    def in_map(c, i):
        # Clamp so the possible single excess step (odd block count) stays in
        # range; its contribution is masked to zero inside the kernel.
        return (jnp.minimum(c * steps_per_split + i, nblocks - 1), 0)

    kernel = functools.partial(
        _mse_kernel, rows=rows, tile_rows=tile_rows,
        steps_per_split=steps_per_split, nblocks=nblocks)

    # Only CORE_PARALLEL actually shards the grid across TensorCores; the
    # reduction (step) axis must stay ARBITRARY (accumulator carried across it).
    leading_sem = pltpu.CORE_PARALLEL if num_splits > 1 else pltpu.ARBITRARY

    out = pl.pallas_call(
        kernel,
        out_shape=jax.ShapeDtypeStruct((num_splits, 8, LANES), jnp.float32),
        grid_spec=pltpu.PrefetchScalarGridSpec(
            num_scalar_prefetch=0,
            grid=(num_splits, steps_per_split),
            in_specs=[
                pl.BlockSpec((tile_rows, LANES), in_map),
                pl.BlockSpec((tile_rows, LANES), in_map),
            ],
            out_specs=pl.BlockSpec((1, 8, LANES), lambda c, i: (c, 0, 0)),
            scratch_shapes=[pltpu.VMEM((8, LANES), jnp.float32)],
        ),
        compiler_params=pltpu.CompilerParams(
            dimension_semantics=(leading_sem, pltpu.ARBITRARY),
            vmem_limit_bytes=VMEM_LIMIT_BYTES,
        ),
        cost_estimate=pl.CostEstimate(
            flops=3 * n,
            transcendentals=0,
            bytes_accessed=2 * n * itemsize + num_splits * 8 * LANES * 4,
        ),
    )(x2d, y2d)

    total = jnp.sum(out[:, 0, 0]) * (1.0 / float(n))
    # PyTorch nn.MSELoss returns a 0-d scalar in the input dtype.
    return total.astype(est_sig.dtype)


if __name__ == "__main__":
    key = jax.random.PRNGKey(0)
    k1, k2 = jax.random.split(key)
    # est_sig / clean_sig: e.g. batch=2, channels=4, spatial=16x16 (NCHW).
    shape = (2, 4, 16, 16)
    est_sig = jax.random.normal(k1, shape, dtype=jnp.float32)
    clean_sig = jax.random.normal(k2, shape, dtype=jnp.float32)

    loss = mse_loss(est_sig, clean_sig)
    jax.block_until_ready(loss)

    # Sanity check against plain-JAX reference.
    ref = jnp.mean((est_sig - clean_sig) ** 2)
    assert jnp.allclose(loss, ref, rtol=1e-5, atol=1e-6), (loss, ref)
    print("KERNEL_OK")
</pallas_src>

<mosaic_0001>
module attributes {stable_mosaic.version = 11 : i64} {
  func.func @_mse_kernel(%arg0: i32, %arg1: i32, %arg2: memref<16x128xf32, #tpu.memory_space<vmem>>, %arg3: memref<16x128xf32, #tpu.memory_space<vmem>>, %arg4: memref<1x8x128xf32, #tpu.memory_space<vmem>>, %arg5: memref<8x128xf32, #tpu.memory_space<vmem>>) attributes {dimension_semantics = [#tpu.dimension_semantics<arbitrary>, #tpu.dimension_semantics<arbitrary>], iteration_bounds = array<i64: 1, 1>, scalar_prefetch = 0 : i64, scratch_operands = 1 : i64, tpu.core_type = #tpu.core_type<tc>, window_params = [{transform_indices = @transform_0, window_bounds = array<i64: 16, 128>}, {transform_indices = @transform_1, window_bounds = array<i64: 16, 128>}, {transform_indices = @transform_2, window_bounds = array<i64: 1, 8, 128>}]} {
    %c0_i32 = arith.constant 0 : i32
    %0 = arith.cmpi eq, %arg1, %c0_i32 : i32
    %1 = arith.extui %0 : i1 to i32
    %c0_i32_0 = arith.constant 0 : i32
    %2 = arith.cmpi ne, %1, %c0_i32_0 : i32
    scf.if %2 {
      %cst = arith.constant 0.000000e+00 : f32
      %14 = vector.broadcast %cst : f32 to vector<8x128xf32>
      %c0 = arith.constant 0 : index
      %c0_7 = arith.constant 0 : index
      %15 = vector.load %arg5[%c0, %c0_7] : memref<8x128xf32, #tpu.memory_space<vmem>>, vector<8x128xf32>
      tpu.vector_store %arg5[%c0, %c0_7], %14 {strides = array<i32>} : memref<8x128xf32, #tpu.memory_space<vmem>>, vector<8x128xf32>,
    } else {
    }
    %c1_i32 = arith.constant 1 : i32
    %3 = arith.muli %arg0, %c1_i32 : i32
    %4 = arith.addi %3, %arg1 : i32
    %c0_i32_1 = arith.constant 0 : i32
    %5 = arith.cmpi slt, %4, %c0_i32_1 : i32
    %6 = arith.extui %5 : i1 to i32
    %c0_i32_2 = arith.constant 0 : i32
    %7 = arith.cmpi ne, %6, %c0_i32_2 : i32
    scf.if %7 {
      %c0 = arith.constant 0 : index
      %c0_7 = arith.constant 0 : index
      %14 = vector.load %arg2[%c0, %c0_7] : memref<16x128xf32, #tpu.memory_space<vmem>>, vector<16x128xf32>
      %c0_8 = arith.constant 0 : index
      %c0_9 = arith.constant 0 : index
      %15 = vector.load %arg3[%c0_8, %c0_9] : memref<16x128xf32, #tpu.memory_space<vmem>>, vector<16x128xf32>
      %16 = arith.subf %14, %15 : vector<16x128xf32>
      %17 = arith.mulf %16, %16 : vector<16x128xf32>
      %c0_10 = arith.constant 0 : index
      %c0_11 = arith.constant 0 : index
      %18 = vector.load %arg5[%c0_10, %c0_11] : memref<8x128xf32, #tpu.memory_space<vmem>>, vector<8x128xf32>
      %19 = vector.shape_cast %17 : vector<16x128xf32> to vector<2x8x128xf32>
      %cst = arith.constant dense<0.000000e+00> : vector<8x128xf32>
      %20 = vector.multi_reduction <add>, %19, %cst [0] : vector<2x8x128xf32> to vector<8x128xf32>
      %21 = arith.addf %18, %20 : vector<8x128xf32>
      %c0_12 = arith.constant 0 : index
      %c0_13 = arith.constant 0 : index
      %22 = vector.load %arg5[%c0_12, %c0_13] : memref<8x128xf32, #tpu.memory_space<vmem>>, vector<8x128xf32>
      tpu.vector_store %arg5[%c0_12, %c0_13], %21 {strides = array<i32>} : memref<8x128xf32, #tpu.memory_space<vmem>>, vector<8x128xf32>,
    } else {
    }
    %c0_i32_3 = arith.constant 0 : i32
    %8 = arith.cmpi sge, %4, %c0_i32_3 : i32
    %9 = arith.extui %8 : i1 to i32
    %c0_i32_4 = arith.constant 0 : i32
    %10 = arith.cmpi ne, %9, %c0_i32_4 : i32
    scf.if %10 {
      %c16_i32 = arith.constant 16 : i32
      %14 = arith.muli %4, %c16_i32 : i32
      %15 = tpu.iota {dimensions = array<i32: 0>} : vector<16x128xi32>
      %16 = vector.broadcast %14 : i32 to vector<16x128xi32>
      %17 = arith.addi %16, %15 : vector<16x128xi32>
      %c0 = arith.constant 0 : index
      %c0_7 = arith.constant 0 : index
      %18 = vector.load %arg2[%c0, %c0_7] : memref<16x128xf32, #tpu.memory_space<vmem>>, vector<16x128xf32>
      %c0_8 = arith.constant 0 : index
      %c0_9 = arith.constant 0 : index
      %19 = vector.load %arg3[%c0_8, %c0_9] : memref<16x128xf32, #tpu.memory_space<vmem>>, vector<16x128xf32>
      %20 = arith.subf %18, %19 : vector<16x128xf32>
      %c16_i32_10 = arith.constant 16 : i32
      %21 = vector.broadcast %c16_i32_10 : i32 to vector<16x128xi32>
      %22 = arith.cmpi slt, %17, %21 : vector<16x128xi32>
      %cst = arith.constant 0.000000e+00 : f32
      %23 = vector.broadcast %cst : f32 to vector<16x128xf32>
      %24 = arith.select %22, %20, %23 : vector<16x128xi1>, vector<16x128xf32>
      %25 = arith.mulf %24, %24 : vector<16x128xf32>
      %c0_11 = arith.constant 0 : index
      %c0_12 = arith.constant 0 : index
      %26 = vector.load %arg5[%c0_11, %c0_12] : memref<8x128xf32, #tpu.memory_space<vmem>>, vector<8x128xf32>
      %27 = vector.shape_cast %25 : vector<16x128xf32> to vector<2x8x128xf32>
      %cst_13 = arith.constant dense<0.000000e+00> : vector<8x128xf32>
      %28 = vector.multi_reduction <add>, %27, %cst_13 [0] : vector<2x8x128xf32> to vector<8x128xf32>
      %29 = arith.addf %26, %28 : vector<8x128xf32>
      %c0_14 = arith.constant 0 : index
      %c0_15 = arith.constant 0 : index
      %30 = vector.load %arg5[%c0_14, %c0_15] : memref<8x128xf32, #tpu.memory_space<vmem>>, vector<8x128xf32>
      tpu.vector_store %arg5[%c0_14, %c0_15], %29 {strides = array<i32>} : memref<8x128xf32, #tpu.memory_space<vmem>>, vector<8x128xf32>,
    } else {
    }
    %c0_i32_5 = arith.constant 0 : i32
    %11 = arith.cmpi eq, %arg1, %c0_i32_5 : i32
    %12 = arith.extui %11 : i1 to i32
    %c0_i32_6 = arith.constant 0 : i32
    %13 = arith.cmpi ne, %12, %c0_i32_6 : i32
    scf.if %13 {
      %c0 = arith.constant 0 : index
      %c0_7 = arith.constant 0 : index
      %14 = vector.load %arg5[%c0, %c0_7] : memref<8x128xf32, #tpu.memory_space<vmem>>, vector<8x128xf32>
      %15 = vector.shape_cast %14 : vector<8x128xf32> to vector<1x8x128xf32>
      %cst = arith.constant dense<0.000000e+00> : vector<1xf32>
      %16 = vector.multi_reduction <add>, %15, %cst [1, 2] : vector<1x8x128xf32> to vector<1xf32>
      %17 = vector.shape_cast %16 : vector<1xf32> to vector<1x1x1xf32>
      %18 = vector.extract %17[0, 0, 0] : f32 from vector<1x1x1xf32>
      %19 = vector.broadcast %18 : f32 to vector<1x8x128xf32>
      %c0_8 = arith.constant 0 : index
      %c0_9 = arith.constant 0 : index
      %c0_10 = arith.constant 0 : index
      %20 = vector.load %arg4[%c0_8, %c0_9, %c0_10] : memref<1x8x128xf32, #tpu.memory_space<vmem>>, vector<1x8x128xf32>
      tpu.vector_store %arg4[%c0_8, %c0_9, %c0_10], %19 {strides = array<i32>} : memref<1x8x128xf32, #tpu.memory_space<vmem>>, vector<1x8x128xf32>,
    } else {
    }
    return
  }
  func.func @transform_0(%arg0: i32, %arg1: i32) -> (i32, i32) {
    %c1_i32 = arith.constant 1 : i32
    %0 = arith.muli %arg0, %c1_i32 : i32
    %1 = arith.addi %0, %arg1 : i32
    %c0_i32 = arith.constant 0 : i32
    %2 = arith.minsi %1, %c0_i32 : i32
    %c0_i32_0 = arith.constant 0 : i32
    %c0_i32_1 = arith.constant 0 : i32
    return %2, %c0_i32_0 : i32, i32
  }
  func.func @transform_1(%arg0: i32, %arg1: i32) -> (i32, i32) {
    %c1_i32 = arith.constant 1 : i32
    %0 = arith.muli %arg0, %c1_i32 : i32
    %1 = arith.addi %0, %arg1 : i32
    %c0_i32 = arith.constant 0 : i32
    %2 = arith.minsi %1, %c0_i32 : i32
    %c0_i32_0 = arith.constant 0 : i32
    %c0_i32_1 = arith.constant 0 : i32
    return %2, %c0_i32_0 : i32, i32
  }
  func.func @transform_2(%arg0: i32, %arg1: i32) -> (i32, i32, i32) {
    %c0_i32 = arith.constant 0 : i32
    %c0_i32_0 = arith.constant 0 : i32
    %c0_i32_1 = arith.constant 0 : i32
    return %arg0, %c0_i32, %c0_i32_0 : i32, i32, i32
  }
}

</mosaic_0001>

<llo_original>
// kernel: tpu_custom_call.1
$region0: #{tpu_custom_call.1}
  #allocation0 [shape = 'u32[]', space=smem, size = 0x4, offset = 0x4, fixed_abs, tag = 'smem constant byte address 0x4 - core index']
  #allocation1 [shape = 'u32[144,128]{1,0:T(1,128)}', space=vmem, size = 0x12000, scoped, tag = 'internal scratch']
  #allocation2 [shape = 'f32[8,128]{1,0:T(8,128)}', space=vmem, size = 0x1000, scoped, tag = 'scratch operand']
  %s0 = inlined_call_operand.hbm [shape: f32[16,128], index: 0, kind: input, shape index: {}]
  %s1 = inlined_call_operand.hbm [shape: f32[16,128], index: 1, kind: input, shape index: {}]
  %s2 = inlined_call_operand.hbm [shape: f32[1,8,128], index: 2, kind: output, shape index: {}]
  %s3 = sld [smem:[#allocation0]]
  $region42: #{tpu_custom_call.1} parent=0
    _
  %s5 = ssub.s32 1, %s3
  %s6 = scalar_select 0, %s5, %s3
  $region1: #{tpu_custom_call.1} parent=0
    #allocation3 [shape = 'u8[8192]{0}', space=vmem, size = 0x2000, scoped, tag = 'input window, operand 0, single buffered']
    #allocation4 [shape = 's32[1]{0}', space=sflag, size = 0x4, scoped, tag = 'scoped memory for tpu_custom_call.1']
    #allocation5 [shape = 's32[1]{0}', space=sflag, size = 0x4, scoped, tag = 'scoped memory for tpu_custom_call.1']
    #allocation6 [shape = 'u8[8192]{0}', space=vmem, size = 0x2000, scoped, tag = 'input window, operand 1, single buffered']
    #allocation7 [shape = 's32[1]{0}', space=sflag, size = 0x4, scoped, tag = 'scoped memory for tpu_custom_call.1']
    #allocation8 [shape = 'u8[4096]{0}', space=vmem, size = 0x1000, scoped, tag = 'output window, operand 0, single buffered']
    %7 = vsyncpa [#allocation4], 0
    %8 = vsyncpa [#allocation7], 0
    %9 = vsyncpa [#allocation5], 0
    // Predicated region
    $region2: #{tpu_custom_call.1} parent=1 // pred_check
      _
    $region3: #{tpu_custom_call.1} parent=1 // pred_check_branch
      %11 = sbr.rel (0) target = $region5
    $region4: #{tpu_custom_call.1} parent=1 // pred_region
      %s12 = sadd.s32 0, 0
      %p13 = scmp.lt.s32.totalorder %s12, 0
      %s14 = scalar_select %p13, %s12, 0
      %s15 = smul.u32 2, %s14
      %s17 = ssub.s32 256, 256
      %18 = vsyncadd [#allocation4], %s17
      %s19 = smul.addr %s15, 128
      %s20 = scalar_lea.hbm %s0, %s19
      %s21 = sshll.u32 [#allocation3], 4
      %s22 = int_to_ptr.vmem [resolvable:$true] %s21
      %27 = dma.hbm_to_vmem [thread:$0]  %s20, 256, %s22, [#allocation4], 128, 128, 8
    $region5: #{tpu_custom_call.1} parent=1 // pred_fallthru
      _
    // Predicated region
    $region6: #{tpu_custom_call.1} parent=1 // pred_check
      _
    $region7: #{tpu_custom_call.1} parent=1 // pred_check_branch
      %29 = sbr.rel (0) target = $region9
    $region8: #{tpu_custom_call.1} parent=1 // pred_region
      %s30 = sadd.s32 0, 0
      %p31 = scmp.lt.s32.totalorder %s30, 0
      %s32 = scalar_select %p31, %s30, 0
      %s33 = smul.u32 2, %s32
      %s35 = ssub.s32 256, 256
      %36 = vsyncadd [#allocation7], %s35
      %s37 = smul.addr %s33, 128
      %s38 = scalar_lea.hbm %s1, %s37
      %s39 = sshll.u32 [#allocation6], 4
      %s40 = int_to_ptr.vmem [resolvable:$true] %s39
      %45 = dma.hbm_to_vmem [thread:$0]  %s38, 256, %s40, [#allocation7], 128, 128, 8
    $region9: #{tpu_custom_call.1} parent=1 // pred_fallthru
      _
    // Predicated region
    $region10: #{tpu_custom_call.1} parent=1 // pred_check
      _
    $region11: #{tpu_custom_call.1} parent=1 // pred_check_branch
      %47 = sbr.rel (0) target = $region13
    $region12: #{tpu_custom_call.1} parent=1 // pred_region
      %48 = dma.done [#allocation4], 256
    $region13: #{tpu_custom_call.1} parent=1 // pred_fallthru
      _
    // Predicated region
    $region14: #{tpu_custom_call.1} parent=1 // pred_check
      _
    $region15: #{tpu_custom_call.1} parent=1 // pred_check_branch
      %50 = sbr.rel (0) target = $region17
    $region16: #{tpu_custom_call.1} parent=1 // pred_region
      %51 = dma.done [#allocation7], 256
    $region17: #{tpu_custom_call.1} parent=1 // pred_fallthru
      _
    %s52 = sadd.s32 0, 0
    %p53 = scmp.lt.s32.totalorder %s52, 0
    %s54 = scalar_select %p53, %s52, 0
    %s55 = smul.u32 2, %s54
    %s56 = sadd.s32 0, 0
    %p57 = scmp.lt.s32.totalorder %s56, 0
    %s58 = scalar_select %p57, %s56, 0
    %s59 = smul.u32 2, %s58
    %p60 = scmp.eq.s32.totalorder 0, 0
    // Predicated region
    $region18: #{tpu_custom_call.1} parent=1 // pred_check
      %p61 = pneg %p60
    $region19: #{tpu_custom_call.1} parent=1 // pred_check_branch
      %63 = sbr.rel (%p61) target = $region21
    $region20: #{tpu_custom_call.1} parent=1 // pred_region
      %64 = vst [vmem:[#allocation2] sm:$0xff] 0.0
    $region21: #{tpu_custom_call.1} parent=1 // pred_fallthru
      _
    %s65 = sadd.s32 0, 0
    %p66 = scmp.lt.s32.totalorder %s65, 0
    // Predicated region
    $region22: #{tpu_custom_call.1} parent=1 // pred_check
      %p67 = pneg %p66
    $region23: #{tpu_custom_call.1} parent=1 // pred_check_branch
      %69 = sbr.rel (%p67) target = $region25
    $region24: #{tpu_custom_call.1} parent=1 // pred_region
      %v70 = vld [vmem:[#allocation3] sm:$0xff]
      %v71 = vld [vmem:[#allocation3 + $0x8] sm:$0xff]
      %v72 = vld [vmem:[#allocation6] sm:$0xff]
      %v73 = vld [vmem:[#allocation6 + $0x8] sm:$0xff]
      %v74 = vsub.f32 %v70, %v72
      %v75 = vsub.f32 %v71, %v73
      %v76 = vmul.f32 %v74, %v74
      %v77 = vmul.f32 %v75, %v75
      %v78 = vld [vmem:[#allocation2] sm:$0xff]
      %v79 = vadd.f32 %v76, %v77
      %v80 = vadd.f32 %v78, %v79
      %81 = vst [vmem:[#allocation2] sm:$0xff] %v80
    $region25: #{tpu_custom_call.1} parent=1 // pred_fallthru
      _
    %p82 = scmp.ge.s32.totalorder %s65, 0
    // Predicated region
    $region26: #{tpu_custom_call.1} parent=1 // pred_check
      %p83 = pneg %p82
    $region27: #{tpu_custom_call.1} parent=1 // pred_check_branch
      %85 = sbr.rel (%p83) target = $region29
    $region28: #{tpu_custom_call.1} parent=1 // pred_region
      %s86 = smul.u32 %s65, 16
      %v87 = vlaneseq
      %v88 = vshrl.u32 %v87, 7
      %v89 = vadd.s32 %v88, 8
      %v90 = vstv %s86
      %v91 = vadd.s32 %v90, %v88
      %v92 = vadd.s32 %v90, %v89
      %v93 = vld [vmem:[#allocation3] sm:$0xff]
      %v94 = vld [vmem:[#allocation3 + $0x8] sm:$0xff]
      %v95 = vld [vmem:[#allocation6] sm:$0xff]
      %v96 = vld [vmem:[#allocation6 + $0x8] sm:$0xff]
      %v97 = vsub.f32 %v93, %v95
      %v98 = vsub.f32 %v94, %v96
      %vm99 = vcmp.lt.s32.totalorder %v91, 16
      %vm100 = vcmp.lt.s32.totalorder %v92, 16
      %v101 = vsel %vm99, %v97, 0.0
      %v102 = vsel %vm100, %v98, 0.0
      %v103 = vmul.f32 %v101, %v101
      %v104 = vmul.f32 %v102, %v102
      %v105 = vld [vmem:[#allocation2] sm:$0xff]
      %v106 = vadd.f32 %v103, %v104
      %v107 = vadd.f32 %v105, %v106
      %108 = vst [vmem:[#allocation2] sm:$0xff] %v107
    $region29: #{tpu_custom_call.1} parent=1 // pred_fallthru
      _
    // Predicated region
    $region30: #{tpu_custom_call.1} parent=1 // pred_check
      %p109 = pneg %p60
    $region31: #{tpu_custom_call.1} parent=1 // pred_check_branch
      %111 = sbr.rel (%p109) target = $region33
    $region32: #{tpu_custom_call.1} parent=1 // pred_region
      %v112 = vld [vmem:[#allocation2] sm:$0xff]
      %113 = vadd.xlane.f32.xlu0 %v112
      %v114 = vpop.xlane.xlu0 %113
      %v115 = vrot.slane %v114, 4
      %v116 = vadd.f32 %v114, %v115
      %v117 = vrot.slane %v116, 2
      %v118 = vadd.f32 %v116, %v117
      %v119 = vrot.slane %v118, 1
      %v120 = vadd.f32 %v118, %v119
      %s121 = vtos %v120
      %v122 = vstv %s121
      %123 = vst [vmem:[#allocation8] sm:$0xff] %v122
    $region33: #{tpu_custom_call.1} parent=1 // pred_fallthru
      _
    // Predicated region
    $region34: #{tpu_custom_call.1} parent=1 // pred_check
      _
    $region35: #{tpu_custom_call.1} parent=1 // pred_check_branch
      %125 = sbr.rel (0) target = $region37
    $region36: #{tpu_custom_call.1} parent=1 // pred_region
      %s127 = ssub.s32 128, 128
      %128 = vsyncadd [#allocation5], %s127
      %s130 = sshll.u32 [#allocation8], 4
      %s131 = int_to_ptr.vmem [resolvable:$true] %s130
      %133 = dma.vmem_to_hbm [thread:$0]  %s131, 128, %s2, [#allocation5]
    $region37: #{tpu_custom_call.1} parent=1 // pred_fallthru
      _
    // Predicated region
    $region38: #{tpu_custom_call.1} parent=1 // pred_check
      _
    $region39: #{tpu_custom_call.1} parent=1 // pred_check_branch
      %135 = sbr.rel (0) target = $region41
    $region40: #{tpu_custom_call.1} parent=1 // pred_region
      %136 = dma.done [#allocation5], 128
    $region41: #{tpu_custom_call.1} parent=1 // pred_fallthru
      _
    %137 = vsyncpa [#allocation4], 1
    %138 = vsyncpa [#allocation7], 1
    %139 = vsyncpa [#allocation5], 1

</llo_original>
